<compile_context>
chip_gen: v7x
topology: tpu7x:2x2x1
jax: 0.10.0
libtpu: 0.0.40
codegen_flags: <defaults>
</compile_context>

<pallas_src>
import jax
import jax.numpy as jnp
from jax.experimental import pallas as pl
from jax.experimental.pallas import tpu as pltpu


def coord_att_kernel(x_ref, pool_ref, eh_ref, ew_ref,
                     w1_ref, b1_ref, wh_ref, bh_ref, ww_ref, bw_ref, o_ref):
    """One grid step processes `nb` samples, each a lane-dense (C, H*W) tile."""
    pool_mat = pool_ref[...]   # (HW, H+W)  [mean-over-W | mean-over-H] pooling matrix
    eh = eh_ref[...]           # (H+W, HW)  rows [0,H) broadcast a_h over W; rows [H,..) are 0
    ew = ew_ref[...]           # (H+W, HW)  rows [H,..) broadcast a_w over H; rows [0,H) are 0
    w1 = w1_ref[...]           # (mip, C)   conv1 weight with bn1 folded in (eval mode)
    b1 = b1_ref[...]           # (mip, 1)
    wh = wh_ref[...]           # (oup, mip)
    bh = bh_ref[...]           # (oup, 1)
    ww = ww_ref[...]           # (oup, mip)
    bw = bw_ref[...]           # (oup, 1)

    nb = x_ref.shape[0]
    for i in range(nb):                                        # static, unrolled
        xi = x_ref[i].astype(jnp.float32)                      # (C, HW) lane-dense
        # pool_h (mean over W) and pool_w (mean over H), concatenated -> (C, H+W)
        pooled = jnp.dot(xi, pool_mat, preferred_element_type=jnp.float32)
        # cat -> conv1 -> bn1(folded) -> h_swish  (single fused matmul)
        y = jnp.dot(w1, pooled, preferred_element_type=jnp.float32) + b1      # (mip, H+W)
        y = y * jnp.clip(y + 3.0, 0.0, 6.0) * (1.0 / 6.0)                     # h_swish
        # conv_h / conv_w + sigmoid.  The extra columns are zeroed by eh/ew
        # below, which also realize the split y[:, :H] / y[:, H:] of the
        # PyTorch graph without any in-kernel slicing/transposing.
        ah = jax.nn.sigmoid(jnp.dot(wh, y, preferred_element_type=jnp.float32) + bh)  # (oup, H+W)
        aw = jax.nn.sigmoid(jnp.dot(ww, y, preferred_element_type=jnp.float32) + bw)  # (oup, H+W)
        # Broadcast the gates to the flattened (oup, HW) layout via constant 0/1 matrices.
        gh = jnp.dot(ah, eh, preferred_element_type=jnp.float32)              # (oup, HW) == a_h[c, p//W]
        gw = jnp.dot(aw, ew, preferred_element_type=jnp.float32)              # (oup, HW) == a_w[c, p% W]
        o_ref[i] = (xi * gh * gw).astype(o_ref.dtype)


def _samples_per_step(n, c, hw, itemsize, vmem_budget_bytes=8 << 20, max_nb=8):
    """Largest divisor of n (<= max_nb) whose block fits the per-block VMEM budget."""
    best = 1
    for nb in range(1, min(n, max_nb) + 1):
        if n % nb == 0 and nb * c * hw * itemsize <= vmem_budget_bytes:
            best = nb
    return best


def coord_att(x, w1_eff, b1_eff, wh, bh, ww, bw):
    N, C, H, W = x.shape
    mip = w1_eff.shape[0]
    oup = wh.shape[0]
    # The final out = identity * a_w * a_h requires oup == inp (same assumption as PyTorch).
    assert oup == C, "CoordAtt gates multiply the identity: requires oup == inp"
    HW = H * W

    # Lane-dense streaming layout for the HBM-bound elementwise path.
    x_flat = x.reshape(N, C, HW)

    # Constant pooling / gate-broadcast matrices (fetched once; tiny).
    hw_idx = jnp.arange(HW, dtype=jnp.int32)
    h_of = hw_idx // W
    w_of = hw_idx % W
    one_hot_h = (h_of[None, :] == jnp.arange(H, dtype=jnp.int32)[:, None]).astype(jnp.float32)  # (H, HW)
    one_hot_w = (w_of[None, :] == jnp.arange(W, dtype=jnp.int32)[:, None]).astype(jnp.float32)  # (W, HW)
    pool_mat = jnp.concatenate([one_hot_h.T / W, one_hot_w.T / H], axis=1)                      # (HW, H+W)
    eh = jnp.concatenate([one_hot_h, jnp.zeros((W, HW), jnp.float32)], axis=0)                  # (H+W, HW)
    ew = jnp.concatenate([jnp.zeros((H, HW), jnp.float32), one_hot_w], axis=0)                  # (H+W, HW)

    itemsize = x.dtype.itemsize
    nb = _samples_per_step(N, C, HW, itemsize)
    grid = (N // nb,)

    # Explicit VMEM budget: in + out blocks double-buffered + constants + headroom.
    block_bytes = nb * C * HW * itemsize
    const_bytes = 4 * (3 * HW * (H + W) + mip * C + mip + 2 * (oup * mip + oup))
    vmem_limit = int(min(max(4 * block_bytes + 2 * const_bytes + (2 << 20), 8 << 20), 64 << 20))

    # Roofline hint: flops are negligible, the kernel is HBM-bandwidth bound.
    matmul_flops = 2 * (C * HW * (H + W) + mip * C * (H + W)
                        + 2 * oup * mip * (H + W) + 2 * oup * (H + W) * HW)
    cost = pl.CostEstimate(
        flops=int(N * (matmul_flops + 2 * C * HW + 8 * mip * (H + W))),
        transcendentals=int(N * 2 * oup * (H + W)),
        bytes_accessed=int(2 * N * C * HW * itemsize + const_bytes),
    )

    def full_spec(arr):
        nd = arr.ndim
        return pl.BlockSpec(arr.shape, lambda n, _nd=nd: (0,) * _nd)

    out_flat = pl.pallas_call(
        coord_att_kernel,
        out_shape=jax.ShapeDtypeStruct((N, C, HW), x.dtype),
        grid=grid,
        in_specs=[
            pl.BlockSpec((nb, C, HW), lambda n: (n, 0, 0)),
            full_spec(pool_mat),
            full_spec(eh),
            full_spec(ew),
            full_spec(w1_eff),
            full_spec(b1_eff),
            full_spec(wh),
            full_spec(bh),
            full_spec(ww),
            full_spec(bw),
        ],
        out_specs=pl.BlockSpec((nb, C, HW), lambda n: (n, 0, 0)),
        compiler_params=pltpu.CompilerParams(
            dimension_semantics=("parallel",),
            vmem_limit_bytes=vmem_limit,
        ),
        cost_estimate=cost,
    )(x_flat, pool_mat, eh, ew, w1_eff, b1_eff, wh, bh, ww, bw)

    return out_flat.reshape(N, C, H, W)


def coord_att_ref(x, w1_eff, b1_eff, wh, bh, ww, bw):
    """Pure-JAX reference (exact pooling / broadcasting) for verification."""
    def hswish(t):
        return t * jnp.clip(t + 3.0, 0.0, 6.0) / 6.0
    xh = x.mean(axis=3)                                   # (N, C, H)
    xw = x.mean(axis=2)                                   # (N, C, W)
    yh = hswish(jnp.einsum('mc,nch->nmh', w1_eff, xh) + b1_eff[None])
    yw = hswish(jnp.einsum('mc,ncw->nmw', w1_eff, xw) + b1_eff[None])
    a_h = jax.nn.sigmoid(jnp.einsum('om,nmh->noh', wh, yh) + bh[None])
    a_w = jax.nn.sigmoid(jnp.einsum('om,nmw->now', ww, yw) + bw[None])
    return x * a_h[:, :, :, None] * a_w[:, :, None, :]


if __name__ == "__main__":
    # Small shapes consistent with the module: inp = oup = 4, reduction = 32
    N, C, H, W = 2, 4, 16, 16
    inp = oup = C
    reduction = 32
    mip = max(8, inp // reduction)       # = 8

    key = jax.random.PRNGKey(0)
    ks = jax.random.split(key, 10)

    x = jax.random.normal(ks[0], (N, C, H, W), dtype=jnp.float32)

    # conv1 (1x1): weight (mip, inp), bias (mip,)
    w1 = jax.random.normal(ks[1], (mip, inp), dtype=jnp.float32) * 0.5
    b1 = jax.random.normal(ks[2], (mip,), dtype=jnp.float32) * 0.1
    # bn1 parameters (eval mode)
    gamma = 1.0 + 0.1 * jax.random.normal(ks[3], (mip,), dtype=jnp.float32)
    beta = 0.1 * jax.random.normal(ks[4], (mip,), dtype=jnp.float32)
    run_mean = 0.1 * jax.random.normal(ks[5], (mip,), dtype=jnp.float32)
    run_var = jax.random.uniform(ks[6], (mip,), minval=0.5, maxval=1.5, dtype=jnp.float32)
    eps = 1e-5
    # Fold BN into conv1 (eval mode: per-channel scale/shift only)
    scale = gamma / jnp.sqrt(run_var + eps)
    w1_eff = w1 * scale[:, None]                            # (mip, inp)
    b1_eff = ((b1 - run_mean) * scale + beta)[:, None]      # (mip, 1)

    # conv_h / conv_w (1x1): weight (oup, mip), bias (oup,)
    wh = jax.random.normal(ks[7], (oup, mip), dtype=jnp.float32) * 0.5
    bh = (0.1 * jax.random.normal(ks[8], (oup,), dtype=jnp.float32))[:, None]
    ww = jax.random.normal(ks[9], (oup, mip), dtype=jnp.float32) * 0.5
    bw = (0.05 * jnp.arange(oup, dtype=jnp.float32))[:, None]

    out = coord_att(x, w1_eff, b1_eff, wh, bh, ww, bw)
    out = jax.block_until_ready(out)

    ref = coord_att_ref(x, w1_eff, b1_eff, wh, bh, ww, bw)
    assert out.shape == (N, C, H, W)
    # Tolerance allows for possible multi-pass bf16 arithmetic on the MXU f32
    # matmul path; any semantic error (wrong pooling axis, wrong broadcast,
    # bad BN fold) would produce O(0.1..1) discrepancies and still be caught.
    assert jnp.allclose(out, ref, rtol=2e-2, atol=2e-2), "mismatch vs reference"

    print("KERNEL_OK")
</pallas_src>

<mosaic_0001>
module attributes {stable_mosaic.version = 11 : i64} {
  func.func @coord_att_kernel(%arg0: i32, %arg1: memref<2x4x256xf32, #tpu.memory_space<vmem>>, %arg2: memref<256x32xf32, #tpu.memory_space<vmem>>, %arg3: memref<32x256xf32, #tpu.memory_space<vmem>>, %arg4: memref<32x256xf32, #tpu.memory_space<vmem>>, %arg5: memref<8x4xf32, #tpu.memory_space<vmem>>, %arg6: memref<8x1xf32, #tpu.memory_space<vmem>>, %arg7: memref<4x8xf32, #tpu.memory_space<vmem>>, %arg8: memref<4x1xf32, #tpu.memory_space<vmem>>, %arg9: memref<4x8xf32, #tpu.memory_space<vmem>>, %arg10: memref<4x1xf32, #tpu.memory_space<vmem>>, %arg11: memref<2x4x256xf32, #tpu.memory_space<vmem>>) attributes {dimension_semantics = [#tpu.dimension_semantics<parallel>], iteration_bounds = array<i64: 1>, scalar_prefetch = 0 : i64, scratch_operands = 0 : i64, tpu.core_type = #tpu.core_type<tc>, window_params = [{transform_indices = @transform_0, window_bounds = array<i64: 2, 4, 256>}, {pipeline_mode = #tpu.pipeline_mode<synchronous>, transform_indices = @transform_1, window_bounds = array<i64: 256, 32>}, {pipeline_mode = #tpu.pipeline_mode<synchronous>, transform_indices = @transform_2, window_bounds = array<i64: 32, 256>}, {pipeline_mode = #tpu.pipeline_mode<synchronous>, transform_indices = @transform_3, window_bounds = array<i64: 32, 256>}, {pipeline_mode = #tpu.pipeline_mode<synchronous>, transform_indices = @transform_4, window_bounds = array<i64: 8, 4>}, {pipeline_mode = #tpu.pipeline_mode<synchronous>, transform_indices = @transform_5, window_bounds = array<i64: 8, 1>}, {pipeline_mode = #tpu.pipeline_mode<synchronous>, transform_indices = @transform_6, window_bounds = array<i64: 4, 8>}, {pipeline_mode = #tpu.pipeline_mode<synchronous>, transform_indices = @transform_7, window_bounds = array<i64: 4, 1>}, {pipeline_mode = #tpu.pipeline_mode<synchronous>, transform_indices = @transform_8, window_bounds = array<i64: 4, 8>}, {pipeline_mode = #tpu.pipeline_mode<synchronous>, transform_indices = @transform_9, window_bounds = array<i64: 4, 1>}, {transform_indices = @transform_10, window_bounds = array<i64: 2, 4, 256>}]} {
    %c0 = arith.constant 0 : index
    %c0_0 = arith.constant 0 : index
    %0 = vector.load %arg2[%c0, %c0_0] : memref<256x32xf32, #tpu.memory_space<vmem>>, vector<256x32xf32>
    %c0_1 = arith.constant 0 : index
    %c0_2 = arith.constant 0 : index
    %1 = vector.load %arg3[%c0_1, %c0_2] : memref<32x256xf32, #tpu.memory_space<vmem>>, vector<32x256xf32>
    %c0_3 = arith.constant 0 : index
    %c0_4 = arith.constant 0 : index
    %2 = vector.load %arg4[%c0_3, %c0_4] : memref<32x256xf32, #tpu.memory_space<vmem>>, vector<32x256xf32>
    %c0_5 = arith.constant 0 : index
    %c0_6 = arith.constant 0 : index
    %3 = vector.load %arg5[%c0_5, %c0_6] : memref<8x4xf32, #tpu.memory_space<vmem>>, vector<8x4xf32>
    %c0_7 = arith.constant 0 : index
    %c0_8 = arith.constant 0 : index
    %4 = vector.load %arg6[%c0_7, %c0_8] : memref<8x1xf32, #tpu.memory_space<vmem>>, vector<8x1xf32>
    %c0_9 = arith.constant 0 : index
    %c0_10 = arith.constant 0 : index
    %5 = vector.load %arg7[%c0_9, %c0_10] : memref<4x8xf32, #tpu.memory_space<vmem>>, vector<4x8xf32>
    %c0_11 = arith.constant 0 : index
    %c0_12 = arith.constant 0 : index
    %6 = vector.load %arg8[%c0_11, %c0_12] : memref<4x1xf32, #tpu.memory_space<vmem>>, vector<4x1xf32>
    %c0_13 = arith.constant 0 : index
    %c0_14 = arith.constant 0 : index
    %7 = vector.load %arg9[%c0_13, %c0_14] : memref<4x8xf32, #tpu.memory_space<vmem>>, vector<4x8xf32>
    %c0_15 = arith.constant 0 : index
    %c0_16 = arith.constant 0 : index
    %8 = vector.load %arg10[%c0_15, %c0_16] : memref<4x1xf32, #tpu.memory_space<vmem>>, vector<4x1xf32>
    %c0_17 = arith.constant 0 : index
    %c0_18 = arith.constant 0 : index
    %c0_19 = arith.constant 0 : index
    %9 = vector.load %arg1[%c0_17, %c0_18, %c0_19] : memref<2x4x256xf32, #tpu.memory_space<vmem>>, vector<1x4x256xf32>
    %10 = vector.shape_cast %9 : vector<1x4x256xf32> to vector<4x256xf32>
    %cst = arith.constant dense<0.000000e+00> : vector<4x32xf32>
    %11 = tpu.matmul %10, %0, %cst {dimension_numbers = #tpu.dot_dimension_numbers<[1], [0], [0], [1], [0, 0, 1, 1], [], []>} : vector<4x256xf32>, vector<256x32xf32>, vector<4x32xf32> -> vector<4x32xf32>
    %cst_20 = arith.constant dense<0.000000e+00> : vector<8x32xf32>
    %12 = tpu.matmul %3, %11, %cst_20 {dimension_numbers = #tpu.dot_dimension_numbers<[1], [0], [0], [1], [0, 0, 1, 1], [], []>} : vector<8x4xf32>, vector<4x32xf32>, vector<8x32xf32> -> vector<8x32xf32>
    %13 = vector.broadcast %4 : vector<8x1xf32> to vector<8x32xf32>
    %14 = arith.addf %12, %13 : vector<8x32xf32>
    %cst_21 = arith.constant 3.000000e+00 : f32
    %15 = vector.broadcast %cst_21 : f32 to vector<8x32xf32>
    %16 = arith.addf %14, %15 : vector<8x32xf32>
    %cst_22 = arith.constant 0.000000e+00 : f32
    %cst_23 = arith.constant 6.000000e+00 : f32
    %17 = vector.broadcast %cst_22 : f32 to vector<8x32xf32>
    %18 = arith.maximumf %17, %16 : vector<8x32xf32>
    %19 = vector.broadcast %cst_23 : f32 to vector<8x32xf32>
    %20 = arith.minimumf %19, %18 : vector<8x32xf32>
    %21 = arith.mulf %14, %20 : vector<8x32xf32>
    %cst_24 = arith.constant 0.166666672 : f32
    %22 = vector.broadcast %cst_24 : f32 to vector<8x32xf32>
    %23 = arith.mulf %21, %22 : vector<8x32xf32>
    %cst_25 = arith.constant dense<0.000000e+00> : vector<4x32xf32>
    %24 = tpu.matmul %5, %23, %cst_25 {dimension_numbers = #tpu.dot_dimension_numbers<[1], [0], [0], [1], [0, 0, 1, 1], [], []>} : vector<4x8xf32>, vector<8x32xf32>, vector<4x32xf32> -> vector<4x32xf32>
    %25 = vector.broadcast %6 : vector<4x1xf32> to vector<4x32xf32>
    %26 = arith.addf %24, %25 : vector<4x32xf32>
    %27 = arith.negf %26 : vector<4x32xf32>
    %28 = math.exp %27 : vector<4x32xf32>
    %cst_26 = arith.constant 1.000000e+00 : f32
    %29 = vector.broadcast %cst_26 : f32 to vector<4x32xf32>
    %30 = arith.addf %29, %28 : vector<4x32xf32>
    %31 = arith.divf %29, %30 : vector<4x32xf32>
    %cst_27 = arith.constant dense<0.000000e+00> : vector<4x32xf32>
    %32 = tpu.matmul %7, %23, %cst_27 {dimension_numbers = #tpu.dot_dimension_numbers<[1], [0], [0], [1], [0, 0, 1, 1], [], []>} : vector<4x8xf32>, vector<8x32xf32>, vector<4x32xf32> -> vector<4x32xf32>
    %33 = vector.broadcast %8 : vector<4x1xf32> to vector<4x32xf32>
    %34 = arith.addf %32, %33 : vector<4x32xf32>
    %35 = arith.negf %34 : vector<4x32xf32>
    %36 = math.exp %35 : vector<4x32xf32>
    %cst_28 = arith.constant 1.000000e+00 : f32
    %37 = vector.broadcast %cst_28 : f32 to vector<4x32xf32>
    %38 = arith.addf %37, %36 : vector<4x32xf32>
    %39 = arith.divf %37, %38 : vector<4x32xf32>
    %cst_29 = arith.constant dense<0.000000e+00> : vector<4x256xf32>
    %40 = tpu.matmul %31, %1, %cst_29 {dimension_numbers = #tpu.dot_dimension_numbers<[1], [0], [0], [1], [0, 0, 1, 1], [], []>} : vector<4x32xf32>, vector<32x256xf32>, vector<4x256xf32> -> vector<4x256xf32>
    %cst_30 = arith.constant dense<0.000000e+00> : vector<4x256xf32>
    %41 = tpu.matmul %39, %2, %cst_30 {dimension_numbers = #tpu.dot_dimension_numbers<[1], [0], [0], [1], [0, 0, 1, 1], [], []>} : vector<4x32xf32>, vector<32x256xf32>, vector<4x256xf32> -> vector<4x256xf32>
    %42 = arith.mulf %10, %40 : vector<4x256xf32>
    %43 = arith.mulf %42, %41 : vector<4x256xf32>
    %c0_31 = arith.constant 0 : index
    %c0_32 = arith.constant 0 : index
    %c0_33 = arith.constant 0 : index
    %44 = vector.load %arg11[%c0_31, %c0_32, %c0_33] : memref<2x4x256xf32, #tpu.memory_space<vmem>>, vector<1x4x256xf32>
    %45 = vector.shape_cast %44 : vector<1x4x256xf32> to vector<4x256xf32>
    %46 = vector.shape_cast %43 : vector<4x256xf32> to vector<1x4x256xf32>
    tpu.vector_store %arg11[%c0_31, %c0_32, %c0_33], %46 {strides = array<i32>} : memref<2x4x256xf32, #tpu.memory_space<vmem>>, vector<1x4x256xf32>,
    %c1 = arith.constant 1 : index
    %c0_34 = arith.constant 0 : index
    %c0_35 = arith.constant 0 : index
    %47 = vector.load %arg1[%c1, %c0_34, %c0_35] : memref<2x4x256xf32, #tpu.memory_space<vmem>>, vector<1x4x256xf32>
    %48 = vector.shape_cast %47 : vector<1x4x256xf32> to vector<4x256xf32>
    %cst_36 = arith.constant dense<0.000000e+00> : vector<4x32xf32>
    %49 = tpu.matmul %48, %0, %cst_36 {dimension_numbers = #tpu.dot_dimension_numbers<[1], [0], [0], [1], [0, 0, 1, 1], [], []>} : vector<4x256xf32>, vector<256x32xf32>, vector<4x32xf32> -> vector<4x32xf32>
    %cst_37 = arith.constant dense<0.000000e+00> : vector<8x32xf32>
    %50 = tpu.matmul %3, %49, %cst_37 {dimension_numbers = #tpu.dot_dimension_numbers<[1], [0], [0], [1], [0, 0, 1, 1], [], []>} : vector<8x4xf32>, vector<4x32xf32>, vector<8x32xf32> -> vector<8x32xf32>
    %51 = vector.broadcast %4 : vector<8x1xf32> to vector<8x32xf32>
    %52 = arith.addf %50, %51 : vector<8x32xf32>
    %cst_38 = arith.constant 3.000000e+00 : f32
    %53 = vector.broadcast %cst_38 : f32 to vector<8x32xf32>
    %54 = arith.addf %52, %53 : vector<8x32xf32>
    %cst_39 = arith.constant 0.000000e+00 : f32
    %cst_40 = arith.constant 6.000000e+00 : f32
    %55 = vector.broadcast %cst_39 : f32 to vector<8x32xf32>
    %56 = arith.maximumf %55, %54 : vector<8x32xf32>
    %57 = vector.broadcast %cst_40 : f32 to vector<8x32xf32>
    %58 = arith.minimumf %57, %56 : vector<8x32xf32>
    %59 = arith.mulf %52, %58 : vector<8x32xf32>
    %cst_41 = arith.constant 0.166666672 : f32
    %60 = vector.broadcast %cst_41 : f32 to vector<8x32xf32>
    %61 = arith.mulf %59, %60 : vector<8x32xf32>
    %cst_42 = arith.constant dense<0.000000e+00> : vector<4x32xf32>
    %62 = tpu.matmul %5, %61, %cst_42 {dimension_numbers = #tpu.dot_dimension_numbers<[1], [0], [0], [1], [0, 0, 1, 1], [], []>} : vector<4x8xf32>, vector<8x32xf32>, vector<4x32xf32> -> vector<4x32xf32>
    %63 = vector.broadcast %6 : vector<4x1xf32> to vector<4x32xf32>
    %64 = arith.addf %62, %63 : vector<4x32xf32>
    %65 = arith.negf %64 : vector<4x32xf32>
    %66 = math.exp %65 : vector<4x32xf32>
    %cst_43 = arith.constant 1.000000e+00 : f32
    %67 = vector.broadcast %cst_43 : f32 to vector<4x32xf32>
    %68 = arith.addf %67, %66 : vector<4x32xf32>
    %69 = arith.divf %67, %68 : vector<4x32xf32>
    %cst_44 = arith.constant dense<0.000000e+00> : vector<4x32xf32>
    %70 = tpu.matmul %7, %61, %cst_44 {dimension_numbers = #tpu.dot_dimension_numbers<[1], [0], [0], [1], [0, 0, 1, 1], [], []>} : vector<4x8xf32>, vector<8x32xf32>, vector<4x32xf32> -> vector<4x32xf32>
    %71 = vector.broadcast %8 : vector<4x1xf32> to vector<4x32xf32>
    %72 = arith.addf %70, %71 : vector<4x32xf32>
    %73 = arith.negf %72 : vector<4x32xf32>
    %74 = math.exp %73 : vector<4x32xf32>
    %cst_45 = arith.constant 1.000000e+00 : f32
    %75 = vector.broadcast %cst_45 : f32 to vector<4x32xf32>
    %76 = arith.addf %75, %74 : vector<4x32xf32>
    %77 = arith.divf %75, %76 : vector<4x32xf32>
    %cst_46 = arith.constant dense<0.000000e+00> : vector<4x256xf32>
    %78 = tpu.matmul %69, %1, %cst_46 {dimension_numbers = #tpu.dot_dimension_numbers<[1], [0], [0], [1], [0, 0, 1, 1], [], []>} : vector<4x32xf32>, vector<32x256xf32>, vector<4x256xf32> -> vector<4x256xf32>
    %cst_47 = arith.constant dense<0.000000e+00> : vector<4x256xf32>
    %79 = tpu.matmul %77, %2, %cst_47 {dimension_numbers = #tpu.dot_dimension_numbers<[1], [0], [0], [1], [0, 0, 1, 1], [], []>} : vector<4x32xf32>, vector<32x256xf32>, vector<4x256xf32> -> vector<4x256xf32>
    %80 = arith.mulf %48, %78 : vector<4x256xf32>
    %81 = arith.mulf %80, %79 : vector<4x256xf32>
    %c1_48 = arith.constant 1 : index
    %c0_49 = arith.constant 0 : index
    %c0_50 = arith.constant 0 : index
    %82 = vector.load %arg11[%c1_48, %c0_49, %c0_50] : memref<2x4x256xf32, #tpu.memory_space<vmem>>, vector<1x4x256xf32>
    %83 = vector.shape_cast %82 : vector<1x4x256xf32> to vector<4x256xf32>
    %84 = vector.shape_cast %81 : vector<4x256xf32> to vector<1x4x256xf32>
    tpu.vector_store %arg11[%c1_48, %c0_49, %c0_50], %84 {strides = array<i32>} : memref<2x4x256xf32, #tpu.memory_space<vmem>>, vector<1x4x256xf32>,
    return
  }
  func.func @transform_0(%arg0: i32) -> (i32, i32, i32) {
    %c0_i32 = arith.constant 0 : i32
    %c0_i32_0 = arith.constant 0 : i32
    %c0_i32_1 = arith.constant 0 : i32
    return %arg0, %c0_i32, %c0_i32_0 : i32, i32, i32
  }
  func.func @transform_1(%arg0: i32) -> (i32, i32) {
    %c0_i32 = arith.constant 0 : i32
    %c0_i32_0 = arith.constant 0 : i32
    %c0_i32_1 = arith.constant 0 : i32
    return %c0_i32, %c0_i32_0 : i32, i32
  }
  func.func @transform_2(%arg0: i32) -> (i32, i32) {
    %c0_i32 = arith.constant 0 : i32
    %c0_i32_0 = arith.constant 0 : i32
    %c0_i32_1 = arith.constant 0 : i32
    return %c0_i32, %c0_i32_0 : i32, i32
  }
  func.func @transform_3(%arg0: i32) -> (i32, i32) {
    %c0_i32 = arith.constant 0 : i32
    %c0_i32_0 = arith.constant 0 : i32
    %c0_i32_1 = arith.constant 0 : i32
    return %c0_i32, %c0_i32_0 : i32, i32
  }
  func.func @transform_4(%arg0: i32) -> (i32, i32) {
    %c0_i32 = arith.constant 0 : i32
    %c0_i32_0 = arith.constant 0 : i32
    %c0_i32_1 = arith.constant 0 : i32
    return %c0_i32, %c0_i32_0 : i32, i32
  }
  func.func @transform_5(%arg0: i32) -> (i32, i32) {
    %c0_i32 = arith.constant 0 : i32
    %c0_i32_0 = arith.constant 0 : i32
    %c0_i32_1 = arith.constant 0 : i32
    return %c0_i32, %c0_i32_0 : i32, i32
  }
  func.func @transform_6(%arg0: i32) -> (i32, i32) {
    %c0_i32 = arith.constant 0 : i32
    %c0_i32_0 = arith.constant 0 : i32
    %c0_i32_1 = arith.constant 0 : i32
    return %c0_i32, %c0_i32_0 : i32, i32
  }
  func.func @transform_7(%arg0: i32) -> (i32, i32) {
    %c0_i32 = arith.constant 0 : i32
    %c0_i32_0 = arith.constant 0 : i32
    %c0_i32_1 = arith.constant 0 : i32
    return %c0_i32, %c0_i32_0 : i32, i32
  }
  func.func @transform_8(%arg0: i32) -> (i32, i32) {
    %c0_i32 = arith.constant 0 : i32
    %c0_i32_0 = arith.constant 0 : i32
    %c0_i32_1 = arith.constant 0 : i32
    return %c0_i32, %c0_i32_0 : i32, i32
  }
  func.func @transform_9(%arg0: i32) -> (i32, i32) {
    %c0_i32 = arith.constant 0 : i32
    %c0_i32_0 = arith.constant 0 : i32
    %c0_i32_1 = arith.constant 0 : i32
    return %c0_i32, %c0_i32_0 : i32, i32
  }
  func.func @transform_10(%arg0: i32) -> (i32, i32, i32) {
    %c0_i32 = arith.constant 0 : i32
    %c0_i32_0 = arith.constant 0 : i32
    %c0_i32_1 = arith.constant 0 : i32
    return %arg0, %c0_i32, %c0_i32_0 : i32, i32, i32
  }
}

</mosaic_0001>

<llo_original>
// kernel: tpu_custom_call.1
$region0: #{tpu_custom_call.1}
  #allocation0 [shape = 'u32[]', space=smem, size = 0x4, offset = 0x4, fixed_abs, tag = 'smem constant byte address 0x4 - core index']
  #allocation1 [shape = 'u32[144,128]{1,0:T(1,128)}', space=vmem, size = 0x12000, scoped, tag = 'internal scratch']
  %s0 = inlined_call_operand.vmem [shape: f32[2,4,256], index: 0, kind: input, shape index: {}]
  %s1 = inlined_call_operand.vmem [shape: f32[256,32], index: 1, kind: input, shape index: {}]
  %s2 = inlined_call_operand.vmem [shape: f32[32,256], index: 2, kind: input, shape index: {}]
  %s3 = inlined_call_operand.vmem [shape: f32[32,256], index: 3, kind: input, shape index: {}]
  %s4 = inlined_call_operand.vmem [shape: f32[8,4], index: 4, kind: input, shape index: {}]
  %s5 = inlined_call_operand.vmem [shape: f32[8,1], index: 5, kind: input, shape index: {}]
  %s6 = inlined_call_operand.vmem [shape: f32[4,8], index: 6, kind: input, shape index: {}]
  %s7 = inlined_call_operand.vmem [shape: f32[4,1], index: 7, kind: input, shape index: {}]
  %s8 = inlined_call_operand.vmem [shape: f32[4,8], index: 8, kind: input, shape index: {}]
  %s9 = inlined_call_operand.vmem [shape: f32[4,1], index: 9, kind: input, shape index: {}]
  %s10 = inlined_call_operand.hbm [shape: f32[2,4,256], index: 10, kind: output, shape index: {}]
  %s11 = sld [smem:[#allocation0]]
  $region50: #{tpu_custom_call.1} parent=0
    _
  %s13 = ssub.s32 1, %s11
  %s14 = scalar_select 0, %s13, %s11
  $region1: #{tpu_custom_call.1} parent=0
    #allocation2 [shape = 'u8[8192]{0}', space=vmem, size = 0x2000, scoped, tag = 'output window, operand 0, single buffered']
    #allocation3 [shape = 's32[1]{0}', space=sflag, size = 0x4, scoped, tag = 'scoped memory for tpu_custom_call.1']
    %15 = vsyncpa [#allocation3], 0
    // Predicated region
    $region2: #{tpu_custom_call.1} parent=1 // pred_check
      _
    $region3: #{tpu_custom_call.1} parent=1 // pred_check_branch
      %17 = sbr.rel (0) target = $region5
    $region4: #{tpu_custom_call.1} parent=1 // pred_region
      _
    $region5: #{tpu_custom_call.1} parent=1 // pred_fallthru
      _
    // Predicated region
    $region6: #{tpu_custom_call.1} parent=1 // pred_check
      _
    $region7: #{tpu_custom_call.1} parent=1 // pred_check_branch
      %19 = sbr.rel (0) target = $region9
    $region8: #{tpu_custom_call.1} parent=1 // pred_region
      _
    $region9: #{tpu_custom_call.1} parent=1 // pred_fallthru
      _
    // Predicated region
    $region10: #{tpu_custom_call.1} parent=1 // pred_check
      _
    $region11: #{tpu_custom_call.1} parent=1 // pred_check_branch
      %21 = sbr.rel (0) target = $region13
    $region12: #{tpu_custom_call.1} parent=1 // pred_region
      _
    $region13: #{tpu_custom_call.1} parent=1 // pred_fallthru
      _
    // Predicated region
    $region14: #{tpu_custom_call.1} parent=1 // pred_check
      _
    $region15: #{tpu_custom_call.1} parent=1 // pred_check_branch
      %23 = sbr.rel (0) target = $region17
    $region16: #{tpu_custom_call.1} parent=1 // pred_region
      _
    $region17: #{tpu_custom_call.1} parent=1 // pred_fallthru
      _
    // Predicated region
    $region18: #{tpu_custom_call.1} parent=1 // pred_check
      _
    $region19: #{tpu_custom_call.1} parent=1 // pred_check_branch
      %25 = sbr.rel (0) target = $region21
    $region20: #{tpu_custom_call.1} parent=1 // pred_region
      _
    $region21: #{tpu_custom_call.1} parent=1 // pred_fallthru
      _
    // Predicated region
    $region22: #{tpu_custom_call.1} parent=1 // pred_check
      _
    $region23: #{tpu_custom_call.1} parent=1 // pred_check_branch
      %27 = sbr.rel (0) target = $region25
    $region24: #{tpu_custom_call.1} parent=1 // pred_region
      _
    $region25: #{tpu_custom_call.1} parent=1 // pred_fallthru
      _
    // Predicated region
    $region26: #{tpu_custom_call.1} parent=1 // pred_check
      _
    $region27: #{tpu_custom_call.1} parent=1 // pred_check_branch
      %29 = sbr.rel (0) target = $region29
    $region28: #{tpu_custom_call.1} parent=1 // pred_region
      _
    $region29: #{tpu_custom_call.1} parent=1 // pred_fallthru
      _
    // Predicated region
    $region30: #{tpu_custom_call.1} parent=1 // pred_check
      _
    $region31: #{tpu_custom_call.1} parent=1 // pred_check_branch
      %31 = sbr.rel (0) target = $region33
    $region32: #{tpu_custom_call.1} parent=1 // pred_region
      _
    $region33: #{tpu_custom_call.1} parent=1 // pred_fallthru
      _
    // Predicated region
    $region34: #{tpu_custom_call.1} parent=1 // pred_check
      _
    $region35: #{tpu_custom_call.1} parent=1 // pred_check_branch
      %33 = sbr.rel (0) target = $region37
    $region36: #{tpu_custom_call.1} parent=1 // pred_region
      _
    $region37: #{tpu_custom_call.1} parent=1 // pred_fallthru
      _
    // Predicated region
    $region38: #{tpu_custom_call.1} parent=1 // pred_check
      _
    $region39: #{tpu_custom_call.1} parent=1 // pred_check_branch
      %35 = sbr.rel (0) target = $region41
    $region40: #{tpu_custom_call.1} parent=1 // pred_region
      _
    $region41: #{tpu_custom_call.1} parent=1 // pred_fallthru
      _
    %v36 = vld [vmem:[%s1] sm:$0xff]
    %v37 = vld [vmem:[%s1 + $0x8] sm:$0xff]
    %v38 = vld [vmem:[%s1 + $0x10] sm:$0xff]
    %v39 = vld [vmem:[%s1 + $0x18] sm:$0xff]
    %v40 = vld [vmem:[%s1 + $0x20] sm:$0xff]
    %v41 = vld [vmem:[%s1 + $0x28] sm:$0xff]
    %v42 = vld [vmem:[%s1 + $0x30] sm:$0xff]
    %v43 = vld [vmem:[%s1 + $0x38] sm:$0xff]
    %v44 = vld [vmem:[%s1 + $0x40] sm:$0xff]
    %v45 = vld [vmem:[%s1 + $0x48] sm:$0xff]
    %v46 = vld [vmem:[%s1 + $0x50] sm:$0xff]
    %v47 = vld [vmem:[%s1 + $0x58] sm:$0xff]
    %v48 = vld [vmem:[%s1 + $0x60] sm:$0xff]
    %v49 = vld [vmem:[%s1 + $0x68] sm:$0xff]
    %v50 = vld [vmem:[%s1 + $0x70] sm:$0xff]
    %v51 = vld [vmem:[%s1 + $0x78] sm:$0xff]
    %v52 = vld [vmem:[%s1 + $0x80] sm:$0xff]
    %v53 = vld [vmem:[%s1 + $0x88] sm:$0xff]
    %v54 = vld [vmem:[%s1 + $0x90] sm:$0xff]
    %v55 = vld [vmem:[%s1 + $0x98] sm:$0xff]
    %v56 = vld [vmem:[%s1 + $0xa0] sm:$0xff]
    %v57 = vld [vmem:[%s1 + $0xa8] sm:$0xff]
    %v58 = vld [vmem:[%s1 + $0xb0] sm:$0xff]
    %v59 = vld [vmem:[%s1 + $0xb8] sm:$0xff]
    %v60 = vld [vmem:[%s1 + $0xc0] sm:$0xff]
    %v61 = vld [vmem:[%s1 + $0xc8] sm:$0xff]
    %v62 = vld [vmem:[%s1 + $0xd0] sm:$0xff]
    %v63 = vld [vmem:[%s1 + $0xd8] sm:$0xff]
    %v64 = vld [vmem:[%s1 + $0xe0] sm:$0xff]
    %v65 = vld [vmem:[%s1 + $0xe8] sm:$0xff]
    %v66 = vld [vmem:[%s1 + $0xf0] sm:$0xff]
    %v67 = vld [vmem:[%s1 + $0xf8] sm:$0xff]
    %v68 = vld [vmem:[%s2] sm:$0xff]
    %v69 = vld [vmem:[%s2 + $0x8] sm:$0xff]
    %v70 = vld [vmem:[%s2 + $0x10] sm:$0xff]
    %v71 = vld [vmem:[%s2 + $0x18] sm:$0xff]
    %v72 = vld [vmem:[%s2 + $0x20] sm:$0xff]
    %v73 = vld [vmem:[%s2 + $0x28] sm:$0xff]
    %v74 = vld [vmem:[%s2 + $0x30] sm:$0xff]
    %v75 = vld [vmem:[%s2 + $0x38] sm:$0xff]
    %v76 = vld [vmem:[%s3] sm:$0xff]
    %v77 = vld [vmem:[%s3 + $0x8] sm:$0xff]
    %v78 = vld [vmem:[%s3 + $0x10] sm:$0xff]
    %v79 = vld [vmem:[%s3 + $0x18] sm:$0xff]
    %v80 = vld [vmem:[%s3 + $0x20] sm:$0xff]
    %v81 = vld [vmem:[%s3 + $0x28] sm:$0xff]
    %v82 = vld [vmem:[%s3 + $0x30] sm:$0xff]
    %v83 = vld [vmem:[%s3 + $0x38] sm:$0xff]
    %v84 = vld [vmem:[%s4] sm:$0xff]
    %v85 = vld [vmem:[%s5] sm:$0xff]
    %v86 = vld [vmem:[%s6] sm:$0xf]
    %v87 = vld [vmem:[%s7] sm:$0xf]
    %v88 = vld [vmem:[%s8] sm:$0xf]
    %v89 = vld [vmem:[%s9] sm:$0xf]
    %v90 = vld [vmem:[%s0] sm:$0xff]
    %v92 = vcombine.high %v90, %v90
    %94 = vmatprep.subr.mxu0 0.0
    %95 = vmatpush1.msra.mxu0 %v36
    %96 = vmatprep.subr.mxu0 0.0
    %97 = vmatpush1.msra.mxu0 %v37
    %98 = vmatprep.subr.mxu0 0.0
    %99 = vmatpush1.msra.mxu0 %v38
    %100 = vmatprep.subr.mxu0 0.0
    %101 = vmatpush1.msra.mxu0 %v39
    %102 = vmatprep.subr.mxu0 0.0
    %103 = vmatpush1.msra.mxu0 %v40
    %104 = vmatprep.subr.mxu0 0.0
    %105 = vmatpush1.msra.mxu0 %v41
    %106 = vmatprep.subr.mxu0 0.0
    %107 = vmatpush1.msra.mxu0 %v42
    %108 = vmatprep.subr.mxu0 0.0
    %109 = vmatpush1.msra.mxu0 %v43
    %110 = vmatprep.subr.mxu0 0.0
    %111 = vmatpush1.msra.mxu0 %v44
    %112 = vmatprep.subr.mxu0 0.0
    %113 = vmatpush1.msra.mxu0 %v45
    %114 = vmatprep.subr.mxu0 0.0
    %115 = vmatpush1.msra.mxu0 %v46
    %116 = vmatprep.subr.mxu0 0.0
    %117 = vmatpush1.msra.mxu0 %v47
    %118 = vmatprep.subr.mxu0 0.0
    %119 = vmatpush1.msra.mxu0 %v48
    %120 = vmatprep.subr.mxu0 0.0
    %121 = vmatpush1.msra.mxu0 %v49
    %122 = vmatprep.subr.mxu0 0.0
    %123 = vmatpush1.msra.mxu0 %v50
    %124 = vmatprep.subr.mxu0 0.0
    %125 = vmatpush1.msra.mxu0 %v51
    %126 = vmatprep.subr.mxu0 0.0
    %127 = vmatpush1.msra.mxu0 %v52
    %128 = vmatprep.subr.mxu0 0.0
    %129 = vmatpush1.msra.mxu0 %v53
    %130 = vmatprep.subr.mxu0 0.0
    %131 = vmatpush1.msra.mxu0 %v54
    %132 = vmatprep.subr.mxu0 0.0
    %133 = vmatpush1.msra.mxu0 %v55
    %134 = vmatprep.subr.mxu0 0.0
    %135 = vmatpush1.msra.mxu0 %v56
    %136 = vmatprep.subr.mxu0 0.0
    %137 = vmatpush1.msra.mxu0 %v57
    %138 = vmatprep.subr.mxu0 0.0
    %139 = vmatpush1.msra.mxu0 %v58
    %140 = vmatprep.subr.mxu0 0.0
    %141 = vmatpush1.msra.mxu0 %v59
    %142 = vmatprep.subr.mxu0 0.0
    %143 = vmatpush1.msra.mxu0 %v60
    %144 = vmatprep.subr.mxu0 0.0
    %145 = vmatpush1.msra.mxu0 %v61
    %146 = vmatprep.subr.mxu0 0.0
    %147 = vmatpush1.msra.mxu0 %v62
    %148 = vmatprep.subr.mxu0 0.0
    %149 = vmatpush1.msra.mxu0 %v63
    %150 = vmatprep.subr.mxu0 0.0
    %151 = vmatpush1.msra.mxu0 %v64
    %152 = vmatprep.subr.mxu0 0.0
    %153 = vmatpush1.msra.mxu0 %v65
    %154 = vmatprep.subr.mxu0 0.0
    %155 = vmatpush1.msra.mxu0 %v66
    %156 = vmatprep.subr.mxu0 0.0
    %157 = vmatpush1.msra.mxu0 %v67
    %158 = vmatprep.mubr.f32.mxu0 %v92
    %159 = vmatmul.mubr.f32.gmra.mrb[0].mxu0 %v90
    %v160 = vpop.f32.mrb[0].mxu0
    %v161 = vadd.f32 0.0, %v160
    %v162 = vpop.f32.mrb[0].mxu0
    %163 = vdwg.mxu0
    %165 = vset.pattern.permute.xlu0 0
    %166 = vperm.xlu0 %165, %v85
    %v167 = vpop.permute.xlu0 %166
    %vm169 = vcmask 31744
    %v171 = vsel %vm169, %v84, 0
    %vm173 = vcmask 1043456
    %v175 = vsel %vm173, %v161, 0
    %177 = vmatprep.subr.mxu0 0.0
    %178 = vmatpush1.msra.mxu0 %v175
    %179 = vmatprep.subr.mxu0 0.0
    %180 = vmatpush1.msra.mxu0 0.0
    %181 = vmatprep.subr.mxu0 0.0
    %182 = vmatpush1.msra.mxu0 0.0
    %183 = vmatprep.subr.mxu0 0.0
    %184 = vmatpush1.msra.mxu0 0.0
    %185 = vmatprep.subr.mxu0 0.0
    %186 = vmatpush1.msra.mxu0 0.0
    %187 = vmatprep.subr.mxu0 0.0
    %188 = vmatpush1.msra.mxu0 0.0
    %189 = vmatprep.subr.mxu0 0.0
    %190 = vmatpush1.msra.mxu0 0.0
    %191 = vmatprep.subr.mxu0 0.0
    %192 = vmatpush1.msra.mxu0 0.0
    %193 = vmatprep.subr.mxu0 0.0
    %194 = vmatpush1.msra.mxu0 0.0
    %195 = vmatprep.subr.mxu0 0.0
    %196 = vmatpush1.msra.mxu0 0.0
    %197 = vmatprep.subr.mxu0 0.0
    %198 = vmatpush1.msra.mxu0 0.0
    %199 = vmatprep.subr.mxu0 0.0
    %200 = vmatpush1.msra.mxu0 0.0
    %201 = vmatprep.subr.mxu0 0.0
    %202 = vmatpush1.msra.mxu0 0.0
    %203 = vmatprep.subr.mxu0 0.0
    %204 = vmatpush1.msra.mxu0 0.0
    %205 = vmatprep.subr.mxu0 0.0
    %206 = vmatpush1.msra.mxu0 0.0
    %207 = vmatprep.subr.mxu0 0.0
    %208 = vmatpush1.msra.mxu0 0.0
    %209 = vmatprep.subr.mxu0 0.0
    %210 = vmatpush1.msra.mxu0 0.0
    %211 = vmatprep.subr.mxu0 0.0
    %212 = vmatpush1.msra.mxu0 0.0
    %213 = vmatprep.subr.mxu0 0.0
    %214 = vmatpush1.msra.mxu0 0.0
    %215 = vmatprep.subr.mxu0 0.0
    %216 = vmatpush1.msra.mxu0 0.0
    %217 = vmatprep.subr.mxu0 0.0
    %218 = vmatpush1.msra.mxu0 0.0
    %219 = vmatprep.subr.mxu0 0.0
    %220 = vmatpush1.msra.mxu0 0.0
    %221 = vmatprep.subr.mxu0 0.0
    %222 = vmatpush1.msra.mxu0 0.0
    %223 = vmatprep.subr.mxu0 0.0
    %224 = vmatpush1.msra.mxu0 0.0
    %225 = vmatprep.subr.mxu0 0.0
    %226 = vmatpush1.msra.mxu0 0.0
    %227 = vmatprep.subr.mxu0 0.0
    %228 = vmatpush1.msra.mxu0 0.0
    %229 = vmatprep.subr.mxu0 0.0
    %230 = vmatpush1.msra.mxu0 0.0
    %231 = vmatprep.subr.mxu0 0.0
    %232 = vmatpush1.msra.mxu0 0.0
    %233 = vmatprep.subr.mxu0 0.0
    %234 = vmatpush1.msra.mxu0 0.0
    %235 = vmatprep.subr.mxu0 0.0
    %236 = vmatpush1.msra.mxu0 0.0
    %237 = vmatprep.subr.mxu0 0.0
    %238 = vmatpush1.msra.mxu0 0.0
    %239 = vmatprep.subr.mxu0 0.0
    %240 = vmatpush1.msra.mxu0 0.0
    %241 = vmatprep.mubr.f32.mxu0 0.0
    %242 = vmatmul.mubr.f32.gmra.mrb[0].mxu0 %v171
    %v243 = vpop.f32.mrb[0].mxu0
    %v244 = vadd.f32 %v167, %v243
    %v245 = vpop.f32.mrb[0].mxu0
    %246 = vdwg.mxu0
    %v247 = vadd.f32 %v244, 3.0
    %v248 = vmax.f32 %v247, 0.0
    %v249 = vmin.f32 %v248, 6.0
    %v250 = vmul.f32 %v244, %v249
    %v251 = vmul.f32 %v250, 0.16666667
    %253 = vset.pattern.permute.xlu0 0
    %254 = vperm.xlu0 %253, %v87
    %v255 = vpop.permute.xlu0 %254
    %vm257 = vcmask 64512
    %v259 = vsel %vm257, %v86, 0
    %261 = vmatprep.subr.mxu0 0.0
    %262 = vmatpush1.msra.mxu0 %v251
    %263 = vmatprep.subr.mxu0 0.0
    %264 = vmatpush1.msra.mxu0 0.0
    %265 = vmatprep.subr.mxu0 0.0
    %266 = vmatpush1.msra.mxu0 0.0
    %267 = vmatprep.subr.mxu0 0.0
    %268 = vmatpush1.msra.mxu0 0.0
    %269 = vmatprep.subr.mxu0 0.0
    %270 = vmatpush1.msra.mxu0 0.0
    %271 = vmatprep.subr.mxu0 0.0
    %272 = vmatpush1.msra.mxu0 0.0
    %273 = vmatprep.subr.mxu0 0.0
    %274 = vmatpush1.msra.mxu0 0.0
    %275 = vmatprep.subr.mxu0 0.0
    %276 = vmatpush1.msra.mxu0 0.0
    %277 = vmatprep.subr.mxu0 0.0
    %278 = vmatpush1.msra.mxu0 0.0
    %279 = vmatprep.subr.mxu0 0.0
    %280 = vmatpush1.msra.mxu0 0.0
    %281 = vmatprep.subr.mxu0 0.0
    %282 = vmatpush1.msra.mxu0 0.0
    %283 = vmatprep.subr.mxu0 0.0
    %284 = vmatpush1.msra.mxu0 0.0
    %285 = vmatprep.subr.mxu0 0.0
    %286 = vmatpush1.msra.mxu0 0.0
    %287 = vmatprep.subr.mxu0 0.0
    %288 = vmatpush1.msra.mxu0 0.0
    %289 = vmatprep.subr.mxu0 0.0
    %290 = vmatpush1.msra.mxu0 0.0
    %291 = vmatprep.subr.mxu0 0.0
    %292 = vmatpush1.msra.mxu0 0.0
    %293 = vmatprep.subr.mxu0 0.0
    %294 = vmatpush1.msra.mxu0 0.0
    %295 = vmatprep.subr.mxu0 0.0
    %296 = vmatpush1.msra.mxu0 0.0
    %297 = vmatprep.subr.mxu0 0.0
    %298 = vmatpush1.msra.mxu0 0.0
    %299 = vmatprep.subr.mxu0 0.0
    %300 = vmatpush1.msra.mxu0 0.0
    %301 = vmatprep.subr.mxu0 0.0
    %302 = vmatpush1.msra.mxu0 0.0
    %303 = vmatprep.subr.mxu0 0.0
    %304 = vmatpush1.msra.mxu0 0.0
    %305 = vmatprep.subr.mxu0 0.0
    %306 = vmatpush1.msra.mxu0 0.0
    %307 = vmatprep.subr.mxu0 0.0
    %308 = vmatpush1.msra.mxu0 0.0
    %309 = vmatprep.subr.mxu0 0.0
    %310 = vmatpush1.msra.mxu0 0.0
    %311 = vmatprep.subr.mxu0 0.0
    %312 = vmatpush1.msra.mxu0 0.0
    %313 = vmatprep.subr.mxu0 0.0
    %314 = vmatpush1.msra.mxu0 0.0
    %315 = vmatprep.subr.mxu0 0.0
    %316 = vmatpush1.msra.mxu0 0.0
    %317 = vmatprep.subr.mxu0 0.0
    %318 = vmatpush1.msra.mxu0 0.0
    %319 = vmatprep.subr.mxu0 0.0
    %320 = vmatpush1.msra.mxu0 0.0
    %321 = vmatprep.subr.mxu0 0.0
    %322 = vmatpush1.msra.mxu0 0.0
    %323 = vmatprep.subr.mxu0 0.0
    %324 = vmatpush1.msra.mxu0 0.0
    %325 = vmatprep.mubr.f32.mxu0 0.0
    %326 = vmatmul.mubr.f32.gmra.mrb[0].mxu0 %v259
    %v327 = vpop.f32.mrb[0].mxu0
    %v328 = vadd.f32 %v255, %v327
    %v329 = vpop.f32.mrb[0].mxu0
    %330 = vdwg.mxu0
    %v331 = vxor.u32 %v328, 2147483648
    %v332 = vmul.f32 %v331, 1.442695
    %v333 = vpow.pop %v332
    %v334 = vadd.f32 %v333, 1.0
    %v335 = vrcp.pop %v334
    %v336 = vmul.f32 1.0, %v335
    %338 = vset.pattern.permute.xlu0 0
    %339 = vperm.xlu0 %338, %v89
    %v340 = vpop.permute.xlu0 %339
    %v343 = vsel %vm257, %v88, 0
    %345 = vmatprep.subr.mxu0 0.0
    %346 = vmatpush1.msra.mxu0 %v251
    %347 = vmatprep.subr.mxu0 0.0
    %348 = vmatpush1.msra.mxu0 0.0
    %349 = vmatprep.subr.mxu0 0.0
    %350 = vmatpush1.msra.mxu0 0.0
    %351 = vmatprep.subr.mxu0 0.0
    %352 = vmatpush1.msra.mxu0 0.0
    %353 = vmatprep.subr.mxu0 0.0
    %354 = vmatpush1.msra.mxu0 0.0
    %355 = vmatprep.subr.mxu0 0.0
    %356 = vmatpush1.msra.mxu0 0.0
    %357 = vmatprep.subr.mxu0 0.0
    %358 = vmatpush1.msra.mxu0 0.0
    %359 = vmatprep.subr.mxu0 0.0
    %360 = vmatpush1.msra.mxu0 0.0
    %361 = vmatprep.subr.mxu0 0.0
    %362 = vmatpush1.msra.mxu0 0.0
    %363 = vmatprep.subr.mxu0 0.0
    %364 = vmatpush1.msra.mxu0 0.0
    %365 = vmatprep.subr.mxu0 0.0
    %366 = vmatpush1.msra.mxu0 0.0
    %367 = vmatprep.subr.mxu0 0.0
    %368 = vmatpush1.msra.mxu0 0.0
    %369 = vmatprep.subr.mxu0 0.0
    %370 = vmatpush1.msra.mxu0 0.0
    %371 = vmatprep.subr.mxu0 0.0
    %372 = vmatpush1.msra.mxu0 0.0
    %373 = vmatprep.subr.mxu0 0.0
    %374 = vmatpush1.msra.mxu0 0.0
    %375 = vmatprep.subr.mxu0 0.0
    %376 = vmatpush1.msra.mxu0 0.0
    %377 = vmatprep.subr.mxu0 0.0
    %378 = vmatpush1.msra.mxu0 0.0
    %379 = vmatprep.subr.mxu0 0.0
    %380 = vmatpush1.msra.mxu0 0.0
    %381 = vmatprep.subr.mxu0 0.0
    %382 = vmatpush1.msra.mxu0 0.0
    %383 = vmatprep.subr.mxu0 0.0
    %384 = vmatpush1.msra.mxu0 0.0
    %385 = vmatprep.subr.mxu0 0.0
    %386 = vmatpush1.msra.mxu0 0.0
    %387 = vmatprep.subr.mxu0 0.0
    %388 = vmatpush1.msra.mxu0 0.0
    %389 = vmatprep.subr.mxu0 0.0
    %390 = vmatpush1.msra.mxu0 0.0
    %391 = vmatprep.subr.mxu0 0.0
    %392 = vmatpush1.msra.mxu0 0.0
    %393 = vmatprep.subr.mxu0 0.0
    %394 = vmatpush1.msra.mxu0 0.0
    %395 = vmatprep.subr.mxu0 0.0
    %396 = vmatpush1.msra.mxu0 0.0
    %397 = vmatprep.subr.mxu0 0.0
    %398 = vmatpush1.msra.mxu0 0.0
    %399 = vmatprep.subr.mxu0 0.0
    %400 = vmatpush1.msra.mxu0 0.0
    %401 = vmatprep.subr.mxu0 0.0
    %402 = vmatpush1.msra.mxu0 0.0
    %403 = vmatprep.subr.mxu0 0.0
    %404 = vmatpush1.msra.mxu0 0.0
    %405 = vmatprep.subr.mxu0 0.0
    %406 = vmatpush1.msra.mxu0 0.0
    %407 = vmatprep.subr.mxu0 0.0
    %408 = vmatpush1.msra.mxu0 0.0
    %409 = vmatprep.mubr.f32.mxu0 0.0
    %410 = vmatmul.mubr.f32.gmra.mrb[0].mxu0 %v343
    %v411 = vpop.f32.mrb[0].mxu0
    %v412 = vadd.f32 %v340, %v411
    %v413 = vpop.f32.mrb[0].mxu0
    %414 = vdwg.mxu0
    %v415 = vxor.u32 %v412, 2147483648
    %v416 = vmul.f32 %v415, 1.442695
    %v417 = vpow.pop %v416
    %v418 = vadd.f32 %v417, 1.0
    %v419 = vrcp.pop %v418
    %v420 = vmul.f32 1.0, %v419
    %vm421 = vcmask 261120
    %v423 = vsel %vm421, %v336, 0
    %425 = vmatprep.subr.mxu0 %v69
    %426 = vmatpush1.msra.mxu0 %v68
    %427 = vmatprep.subr.mxu0 %v71
    %428 = vmatpush1.msra.mxu0 %v70
    %429 = vmatprep.subr.mxu0 %v73
    %430 = vmatpush1.msra.mxu0 %v72
    %431 = vmatprep.subr.mxu0 %v75
    %432 = vmatpush1.msra.mxu0 %v74
    %433 = vmatprep.subr.mxu0 0.0
    %434 = vmatpush1.msra.mxu0 0.0
    %435 = vmatprep.subr.mxu0 0.0
    %436 = vmatpush1.msra.mxu0 0.0
    %437 = vmatprep.subr.mxu0 0.0
    %438 = vmatpush1.msra.mxu0 0.0
    %439 = vmatprep.subr.mxu0 0.0
    %440 = vmatpush1.msra.mxu0 0.0
    %441 = vmatprep.subr.mxu0 0.0
    %442 = vmatpush1.msra.mxu0 0.0
    %443 = vmatprep.subr.mxu0 0.0
    %444 = vmatpush1.msra.mxu0 0.0
    %445 = vmatprep.subr.mxu0 0.0
    %446 = vmatpush1.msra.mxu0 0.0
    %447 = vmatprep.subr.mxu0 0.0
    %448 = vmatpush1.msra.mxu0 0.0
    %449 = vmatprep.subr.mxu0 0.0
    %450 = vmatpush1.msra.mxu0 0.0
    %451 = vmatprep.subr.mxu0 0.0
    %452 = vmatpush1.msra.mxu0 0.0
    %453 = vmatprep.subr.mxu0 0.0
    %454 = vmatpush1.msra.mxu0 0.0
    %455 = vmatprep.subr.mxu0 0.0
    %456 = vmatpush1.msra.mxu0 0.0
    %457 = vmatprep.subr.mxu0 0.0
    %458 = vmatpush1.msra.mxu0 0.0
    %459 = vmatprep.subr.mxu0 0.0
    %460 = vmatpush1.msra.mxu0 0.0
    %461 = vmatprep.subr.mxu0 0.0
    %462 = vmatpush1.msra.mxu0 0.0
    %463 = vmatprep.subr.mxu0 0.0
    %464 = vmatpush1.msra.mxu0 0.0
    %465 = vmatprep.subr.mxu0 0.0
    %466 = vmatpush1.msra.mxu0 0.0
    %467 = vmatprep.subr.mxu0 0.0
    %468 = vmatpush1.msra.mxu0 0.0
    %469 = vmatprep.subr.mxu0 0.0
    %470 = vmatpush1.msra.mxu0 0.0
    %471 = vmatprep.subr.mxu0 0.0
    %472 = vmatpush1.msra.mxu0 0.0
    %473 = vmatprep.subr.mxu0 0.0
    %474 = vmatpush1.msra.mxu0 0.0
    %475 = vmatprep.subr.mxu0 0.0
    %476 = vmatpush1.msra.mxu0 0.0
    %477 = vmatprep.subr.mxu0 0.0
    %478 = vmatpush1.msra.mxu0 0.0
    %479 = vmatprep.subr.mxu0 0.0
    %480 = vmatpush1.msra.mxu0 0.0
    %481 = vmatprep.subr.mxu0 0.0
    %482 = vmatpush1.msra.mxu0 0.0
    %483 = vmatprep.subr.mxu0 0.0
    %484 = vmatpush1.msra.mxu0 0.0
    %485 = vmatprep.subr.mxu0 0.0
    %486 = vmatpush1.msra.mxu0 0.0
    %487 = vmatprep.subr.mxu0 0.0
    %488 = vmatpush1.msra.mxu0 0.0
    %489 = vmatprep.mubr.f32.mxu0 0.0
    %490 = vmatmul.mubr.f32.gmra.mrb[0].mxu0 %v423
    %v491 = vpop.f32.mrb[0].mxu0
    %v492 = vadd.f32 0.0, %v491
    %v493 = vpop.f32.mrb[0].mxu0
    %v494 = vadd.f32 0.0, %v493
    %495 = vdwg.mxu0
    %v497 = vsel %vm421, %v420, 0
    %499 = vmatprep.subr.mxu0 %v77
    %500 = vmatpush1.msra.mxu0 %v76
    %501 = vmatprep.subr.mxu0 %v79
    %502 = vmatpush1.msra.mxu0 %v78
    %503 = vmatprep.subr.mxu0 %v81
    %504 = vmatpush1.msra.mxu0 %v80
    %505 = vmatprep.subr.mxu0 %v83
    %506 = vmatpush1.msra.mxu0 %v82
    %507 = vmatprep.subr.mxu0 0.0
    %508 = vmatpush1.msra.mxu0 0.0
    %509 = vmatprep.subr.mxu0 0.0
    %510 = vmatpush1.msra.mxu0 0.0
    %511 = vmatprep.subr.mxu0 0.0
    %512 = vmatpush1.msra.mxu0 0.0
    %513 = vmatprep.subr.mxu0 0.0
    %514 = vmatpush1.msra.mxu0 0.0
    %515 = vmatprep.subr.mxu0 0.0
    %516 = vmatpush1.msra.mxu0 0.0
    %517 = vmatprep.subr.mxu0 0.0
    %518 = vmatpush1.msra.mxu0 0.0
    %519 = vmatprep.subr.mxu0 0.0
    %520 = vmatpush1.msra.mxu0 0.0
    %521 = vmatprep.subr.mxu0 0.0
    %522 = vmatpush1.msra.mxu0 0.0
    %523 = vmatprep.subr.mxu0 0.0
    %524 = vmatpush1.msra.mxu0 0.0
    %525 = vmatprep.subr.mxu0 0.0
    %526 = vmatpush1.msra.mxu0 0.0
    %527 = vmatprep.subr.mxu0 0.0
    %528 = vmatpush1.msra.mxu0 0.0
    %529 = vmatprep.subr.mxu0 0.0
    %530 = vmatpush1.msra.mxu0 0.0
    %531 = vmatprep.subr.mxu0 0.0
    %532 = vmatpush1.msra.mxu0 0.0
    %533 = vmatprep.subr.mxu0 0.0
    %534 = vmatpush1.msra.mxu0 0.0
    %535 = vmatprep.subr.mxu0 0.0
    %536 = vmatpush1.msra.mxu0 0.0
    %537 = vmatprep.subr.mxu0 0.0
    %538 = vmatpush1.msra.mxu0 0.0
    %539 = vmatprep.subr.mxu0 0.0
    %540 = vmatpush1.msra.mxu0 0.0
    %541 = vmatprep.subr.mxu0 0.0
    %542 = vmatpush1.msra.mxu0 0.0
    %543 = vmatprep.subr.mxu0 0.0
    %544 = vmatpush1.msra.mxu0 0.0
    %545 = vmatprep.subr.mxu0 0.0
    %546 = vmatpush1.msra.mxu0 0.0
    %547 = vmatprep.subr.mxu0 0.0
    %548 = vmatpush1.msra.mxu0 0.0
    %549 = vmatprep.subr.mxu0 0.0
    %550 = vmatpush1.msra.mxu0 0.0
    %551 = vmatprep.subr.mxu0 0.0
    %552 = vmatpush1.msra.mxu0 0.0
    %553 = vmatprep.subr.mxu0 0.0
    %554 = vmatpush1.msra.mxu0 0.0
    %555 = vmatprep.subr.mxu0 0.0
    %556 = vmatpush1.msra.mxu0 0.0
    %557 = vmatprep.subr.mxu0 0.0
    %558 = vmatpush1.msra.mxu0 0.0
    %559 = vmatprep.subr.mxu0 0.0
    %560 = vmatpush1.msra.mxu0 0.0
    %561 = vmatprep.subr.mxu0 0.0
    %562 = vmatpush1.msra.mxu0 0.0
    %563 = vmatprep.mubr.f32.mxu0 0.0
    %564 = vmatmul.mubr.f32.gmra.mrb[0].mxu0 %v497
    %v565 = vpop.f32.mrb[0].mxu0
    %v566 = vadd.f32 0.0, %v565
    %v567 = vpop.f32.mrb[0].mxu0
    %v568 = vadd.f32 0.0, %v567
    %569 = vdwg.mxu0
    %v572 = vcombine.low %v492, %v494
    %v574 = vmul.f32 %v90, %v572
    %v577 = vcombine.low %v566, %v568
    %v579 = vmul.f32 %v574, %v577
    %580 = vst [vmem:[#allocation2] sm:$0xff] %v579
    %s581 = scalar_lea.vmem %s0, 8
    %v582 = vld [vmem:[%s581] sm:$0xff]
    %v584 = vcombine.high %v582, %v582
    %586 = vmatprep.subr.mxu0 0.0
    %587 = vmatpush1.msra.mxu0 %v36
    %588 = vmatprep.subr.mxu0 0.0
    %589 = vmatpush1.msra.mxu0 %v37
    %590 = vmatprep.subr.mxu0 0.0
    %591 = vmatpush1.msra.mxu0 %v38
    %592 = vmatprep.subr.mxu0 0.0
    %593 = vmatpush1.msra.mxu0 %v39
    %594 = vmatprep.subr.mxu0 0.0
    %595 = vmatpush1.msra.mxu0 %v40
    %596 = vmatprep.subr.mxu0 0.0
    %597 = vmatpush1.msra.mxu0 %v41
    %598 = vmatprep.subr.mxu0 0.0
    %599 = vmatpush1.msra.mxu0 %v42
    %600 = vmatprep.subr.mxu0 0.0
    %601 = vmatpush1.msra.mxu0 %v43
    %602 = vmatprep.subr.mxu0 0.0
    %603 = vmatpush1.msra.mxu0 %v44
    %604 = vmatprep.subr.mxu0 0.0
    %605 = vmatpush1.msra.mxu0 %v45
    %606 = vmatprep.subr.mxu0 0.0
    %607 = vmatpush1.msra.mxu0 %v46
    %608 = vmatprep.subr.mxu0 0.0
    %609 = vmatpush1.msra.mxu0 %v47
    %610 = vmatprep.subr.mxu0 0.0
    %611 = vmatpush1.msra.mxu0 %v48
    %612 = vmatprep.subr.mxu0 0.0
    %613 = vmatpush1.msra.mxu0 %v49
    %614 = vmatprep.subr.mxu0 0.0
    %615 = vmatpush1.msra.mxu0 %v50
    %616 = vmatprep.subr.mxu0 0.0
    %617 = vmatpush1.msra.mxu0 %v51
    %618 = vmatprep.subr.mxu0 0.0
    %619 = vmatpush1.msra.mxu0 %v52
    %620 = vmatprep.subr.mxu0 0.0
    %621 = vmatpush1.msra.mxu0 %v53
    %622 = vmatprep.subr.mxu0 0.0
    %623 = vmatpush1.msra.mxu0 %v54
    %624 = vmatprep.subr.mxu0 0.0
    %625 = vmatpush1.msra.mxu0 %v55
    %626 = vmatprep.subr.mxu0 0.0
    %627 = vmatpush1.msra.mxu0 %v56
    %628 = vmatprep.subr.mxu0 0.0
    %629 = vmatpush1.msra.mxu0 %v57
    %630 = vmatprep.subr.mxu0 0.0
    %631 = vmatpush1.msra.mxu0 %v58
    %632 = vmatprep.subr.mxu0 0.0
    %633 = vmatpush1.msra.mxu0 %v59
    %634 = vmatprep.subr.mxu0 0.0
    %635 = vmatpush1.msra.mxu0 %v60
    %636 = vmatprep.subr.mxu0 0.0
    %637 = vmatpush1.msra.mxu0 %v61
    %638 = vmatprep.subr.mxu0 0.0
    %639 = vmatpush1.msra.mxu0 %v62
    %640 = vmatprep.subr.mxu0 0.0
    %641 = vmatpush1.msra.mxu0 %v63
    %642 = vmatprep.subr.mxu0 0.0
    %643 = vmatpush1.msra.mxu0 %v64
    %644 = vmatprep.subr.mxu0 0.0
    %645 = vmatpush1.msra.mxu0 %v65
    %646 = vmatprep.subr.mxu0 0.0
    %647 = vmatpush1.msra.mxu0 %v66
    %648 = vmatprep.subr.mxu0 0.0
    %649 = vmatpush1.msra.mxu0 %v67
    %650 = vmatprep.mubr.f32.mxu0 %v584
    %651 = vmatmul.mubr.f32.gmra.mrb[0].mxu0 %v582
    %v652 = vpop.f32.mrb[0].mxu0
    %v653 = vadd.f32 0.0, %v652
    %v654 = vpop.f32.mrb[0].mxu0
    %655 = vdwg.mxu0
    %v657 = vsel %vm173, %v653, 0
    %659 = vmatprep.subr.mxu0 0.0
    %660 = vmatpush1.msra.mxu0 %v657
    %661 = vmatprep.subr.mxu0 0.0
    %662 = vmatpush1.msra.mxu0 0.0
    %663 = vmatprep.subr.mxu0 0.0
    %664 = vmatpush1.msra.mxu0 0.0
    %665 = vmatprep.subr.mxu0 0.0
    %666 = vmatpush1.msra.mxu0 0.0
    %667 = vmatprep.subr.mxu0 0.0
    %668 = vmatpush1.msra.mxu0 0.0
    %669 = vmatprep.subr.mxu0 0.0
    %670 = vmatpush1.msra.mxu0 0.0
    %671 = vmatprep.subr.mxu0 0.0
    %672 = vmatpush1.msra.mxu0 0.0
    %673 = vmatprep.subr.mxu0 0.0
    %674 = vmatpush1.msra.mxu0 0.0
    %675 = vmatprep.subr.mxu0 0.0
    %676 = vmatpush1.msra.mxu0 0.0
    %677 = vmatprep.subr.mxu0 0.0
    %678 = vmatpush1.msra.mxu0 0.0
    %679 = vmatprep.subr.mxu0 0.0
    %680 = vmatpush1.msra.mxu0 0.0
    %681 = vmatprep.subr.mxu0 0.0
    %682 = vmatpush1.msra.mxu0 0.0
    %683 = vmatprep.subr.mxu0 0.0
    %684 = vmatpush1.msra.mxu0 0.0
    %685 = vmatprep.subr.mxu0 0.0
    %686 = vmatpush1.msra.mxu0 0.0
    %687 = vmatprep.subr.mxu0 0.0
    %688 = vmatpush1.msra.mxu0 0.0
    %689 = vmatprep.subr.mxu0 0.0
    %690 = vmatpush1.msra.mxu0 0.0
    %691 = vmatprep.subr.mxu0 0.0
    %692 = vmatpush1.msra.mxu0 0.0
    %693 = vmatprep.subr.mxu0 0.0
    %694 = vmatpush1.msra.mxu0 0.0
    %695 = vmatprep.subr.mxu0 0.0
    %696 = vmatpush1.msra.mxu0 0.0
    %697 = vmatprep.subr.mxu0 0.0
    %698 = vmatpush1.msra.mxu0 0.0
    %699 = vmatprep.subr.mxu0 0.0
    %700 = vmatpush1.msra.mxu0 0.0
    %701 = vmatprep.subr.mxu0 0.0
    %702 = vmatpush1.msra.mxu0 0.0
    %703 = vmatprep.subr.mxu0 0.0
    %704 = vmatpush1.msra.mxu0 0.0
    %705 = vmatprep.subr.mxu0 0.0
    %706 = vmatpush1.msra.mxu0 0.0
    %707 = vmatprep.subr.mxu0 0.0
    %708 = vmatpush1.msra.mxu0 0.0
    %709 = vmatprep.subr.mxu0 0.0
    %710 = vmatpush1.msra.mxu0 0.0
    %711 = vmatprep.subr.mxu0 0.0
    %712 = vmatpush1.msra.mxu0 0.0
    %713 = vmatprep.subr.mxu0 0.0
    %714 = vmatpush1.msra.mxu0 0.0
    %715 = vmatprep.subr.mxu0 0.0
    %716 = vmatpush1.msra.mxu0 0.0
    %717 = vmatprep.subr.mxu0 0.0
    %718 = vmatpush1.msra.mxu0 0.0
    %719 = vmatprep.subr.mxu0 0.0
    %720 = vmatpush1.msra.mxu0 0.0
    %721 = vmatprep.subr.mxu0 0.0
    %722 = vmatpush1.msra.mxu0 0.0
    %723 = vmatprep.mubr.f32.mxu0 0.0
    %724 = vmatmul.mubr.f32.gmra.mrb[0].mxu0 %v171
    %v725 = vpop.f32.mrb[0].mxu0
    %v726 = vadd.f32 %v167, %v725
    %v727 = vpop.f32.mrb[0].mxu0
    %728 = vdwg.mxu0
    %v729 = vadd.f32 %v726, 3.0
    %v730 = vmax.f32 %v729, 0.0
    %v731 = vmin.f32 %v730, 6.0
    %v732 = vmul.f32 %v726, %v731
    %v733 = vmul.f32 %v732, 0.16666667
    %734 = vmatprep.subr.mxu0 0.0
    %735 = vmatpush1.msra.mxu0 %v733
    %736 = vmatprep.subr.mxu0 0.0
    %737 = vmatpush1.msra.mxu0 0.0
    %738 = vmatprep.subr.mxu0 0.0
    %739 = vmatpush1.msra.mxu0 0.0
    %740 = vmatprep.subr.mxu0 0.0
    %741 = vmatpush1.msra.mxu0 0.0
    %742 = vmatprep.subr.mxu0 0.0
    %743 = vmatpush1.msra.mxu0 0.0
    %744 = vmatprep.subr.mxu0 0.0
    %745 = vmatpush1.msra.mxu0 0.0
    %746 = vmatprep.subr.mxu0 0.0
    %747 = vmatpush1.msra.mxu0 0.0
    %748 = vmatprep.subr.mxu0 0.0
    %749 = vmatpush1.msra.mxu0 0.0
    %750 = vmatprep.subr.mxu0 0.0
    %751 = vmatpush1.msra.mxu0 0.0
    %752 = vmatprep.subr.mxu0 0.0
    %753 = vmatpush1.msra.mxu0 0.0
    %754 = vmatprep.subr.mxu0 0.0
    %755 = vmatpush1.msra.mxu0 0.0
    %756 = vmatprep.subr.mxu0 0.0
    %757 = vmatpush1.msra.mxu0 0.0
    %758 = vmatprep.subr.mxu0 0.0
    %759 = vmatpush1.msra.mxu0 0.0
    %760 = vmatprep.subr.mxu0 0.0
    %761 = vmatpush1.msra.mxu0 0.0
    %762 = vmatprep.subr.mxu0 0.0
    %763 = vmatpush1.msra.mxu0 0.0
    %764 = vmatprep.subr.mxu0 0.0
    %765 = vmatpush1.msra.mxu0 0.0
    %766 = vmatprep.subr.mxu0 0.0
    %767 = vmatpush1.msra.mxu0 0.0
    %768 = vmatprep.subr.mxu0 0.0
    %769 = vmatpush1.msra.mxu0 0.0
    %770 = vmatprep.subr.mxu0 0.0
    %771 = vmatpush1.msra.mxu0 0.0
    %772 = vmatprep.subr.mxu0 0.0
    %773 = vmatpush1.msra.mxu0 0.0
    %774 = vmatprep.subr.mxu0 0.0
    %775 = vmatpush1.msra.mxu0 0.0
    %776 = vmatprep.subr.mxu0 0.0
    %777 = vmatpush1.msra.mxu0 0.0
    %778 = vmatprep.subr.mxu0 0.0
    %779 = vmatpush1.msra.mxu0 0.0
    %780 = vmatprep.subr.mxu0 0.0
    %781 = vmatpush1.msra.mxu0 0.0
    %782 = vmatprep.subr.mxu0 0.0
    %783 = vmatpush1.msra.mxu0 0.0
    %784 = vmatprep.subr.mxu0 0.0
    %785 = vmatpush1.msra.mxu0 0.0
    %786 = vmatprep.subr.mxu0 0.0
    %787 = vmatpush1.msra.mxu0 0.0
    %788 = vmatprep.subr.mxu0 0.0
    %789 = vmatpush1.msra.mxu0 0.0
    %790 = vmatprep.subr.mxu0 0.0
    %791 = vmatpush1.msra.mxu0 0.0
    %792 = vmatprep.subr.mxu0 0.0
    %793 = vmatpush1.msra.mxu0 0.0
    %794 = vmatprep.subr.mxu0 0.0
    %795 = vmatpush1.msra.mxu0 0.0
    %796 = vmatprep.subr.mxu0 0.0
    %797 = vmatpush1.msra.mxu0 0.0
    %798 = vmatprep.mubr.f32.mxu0 0.0
    %799 = vmatmul.mubr.f32.gmra.mrb[0].mxu0 %v259
    %v800 = vpop.f32.mrb[0].mxu0
    %v801 = vadd.f32 %v255, %v800
    %v802 = vpop.f32.mrb[0].mxu0
    %803 = vdwg.mxu0
    %v804 = vxor.u32 %v801, 2147483648
    %v805 = vmul.f32 %v804, 1.442695
    %v806 = vpow.pop %v805
    %v807 = vadd.f32 %v806, 1.0
    %v808 = vrcp.pop %v807
    %v809 = vmul.f32 1.0, %v808
    %810 = vmatprep.subr.mxu0 0.0
    %811 = vmatpush1.msra.mxu0 %v733
    %812 = vmatprep.subr.mxu0 0.0
    %813 = vmatpush1.msra.mxu0 0.0
    %814 = vmatprep.subr.mxu0 0.0
    %815 = vmatpush1.msra.mxu0 0.0
    %816 = vmatprep.subr.mxu0 0.0
    %817 = vmatpush1.msra.mxu0 0.0
    %818 = vmatprep.subr.mxu0 0.0
    %819 = vmatpush1.msra.mxu0 0.0
    %820 = vmatprep.subr.mxu0 0.0
    %821 = vmatpush1.msra.mxu0 0.0
    %822 = vmatprep.subr.mxu0 0.0
    %823 = vmatpush1.msra.mxu0 0.0
    %824 = vmatprep.subr.mxu0 0.0
    %825 = vmatpush1.msra.mxu0 0.0
    %826 = vmatprep.subr.mxu0 0.0
    %827 = vmatpush1.msra.mxu0 0.0
    %828 = vmatprep.subr.mxu0 0.0
    %829 = vmatpush1.msra.mxu0 0.0
    %830 = vmatprep.subr.mxu0 0.0
    %831 = vmatpush1.msra.mxu0 0.0
    %832 = vmatprep.subr.mxu0 0.0
    %833 = vmatpush1.msra.mxu0 0.0
    %834 = vmatprep.subr.mxu0 0.0
    %835 = vmatpush1.msra.mxu0 0.0
    %836 = vmatprep.subr.mxu0 0.0
    %837 = vmatpush1.msra.mxu0 0.0
    %838 = vmatprep.subr.mxu0 0.0
    %839 = vmatpush1.msra.mxu0 0.0
    %840 = vmatprep.subr.mxu0 0.0
    %841 = vmatpush1.msra.mxu0 0.0
    %842 = vmatprep.subr.mxu0 0.0
    %843 = vmatpush1.msra.mxu0 0.0
    %844 = vmatprep.subr.mxu0 0.0
    %845 = vmatpush1.msra.mxu0 0.0
    %846 = vmatprep.subr.mxu0 0.0
    %847 = vmatpush1.msra.mxu0 0.0
    %848 = vmatprep.subr.mxu0 0.0
    %849 = vmatpush1.msra.mxu0 0.0
    %850 = vmatprep.subr.mxu0 0.0
    %851 = vmatpush1.msra.mxu0 0.0
    %852 = vmatprep.subr.mxu0 0.0
    %853 = vmatpush1.msra.mxu0 0.0
    %854 = vmatprep.subr.mxu0 0.0
    %855 = vmatpush1.msra.mxu0 0.0
    %856 = vmatprep.subr.mxu0 0.0
    %857 = vmatpush1.msra.mxu0 0.0
    %858 = vmatprep.subr.mxu0 0.0
    %859 = vmatpush1.msra.mxu0 0.0
    %860 = vmatprep.subr.mxu0 0.0
    %861 = vmatpush1.msra.mxu0 0.0
    %862 = vmatprep.subr.mxu0 0.0
    %863 = vmatpush1.msra.mxu0 0.0
    %864 = vmatprep.subr.mxu0 0.0
    %865 = vmatpush1.msra.mxu0 0.0
    %866 = vmatprep.subr.mxu0 0.0
    %867 = vmatpush1.msra.mxu0 0.0
    %868 = vmatprep.subr.mxu0 0.0
    %869 = vmatpush1.msra.mxu0 0.0
    %870 = vmatprep.subr.mxu0 0.0
    %871 = vmatpush1.msra.mxu0 0.0
    %872 = vmatprep.subr.mxu0 0.0
    %873 = vmatpush1.msra.mxu0 0.0
    %874 = vmatprep.mubr.f32.mxu0 0.0
    %875 = vmatmul.mubr.f32.gmra.mrb[0].mxu0 %v343
    %v876 = vpop.f32.mrb[0].mxu0
    %v877 = vadd.f32 %v340, %v876
    %v878 = vpop.f32.mrb[0].mxu0
    %879 = vdwg.mxu0
    %v880 = vxor.u32 %v877, 2147483648
    %v881 = vmul.f32 %v880, 1.442695
    %v882 = vpow.pop %v881
    %v883 = vadd.f32 %v882, 1.0
    %v884 = vrcp.pop %v883
    %v885 = vmul.f32 1.0, %v884
    %v887 = vsel %vm421, %v809, 0
    %889 = vmatprep.subr.mxu0 %v69
    %890 = vmatpush1.msra.mxu0 %v68
    %891 = vmatprep.subr.mxu0 %v71
    %892 = vmatpush1.msra.mxu0 %v70
    %893 = vmatprep.subr.mxu0 %v73
    %894 = vmatpush1.msra.mxu0 %v72
    %895 = vmatprep.subr.mxu0 %v75
    %896 = vmatpush1.msra.mxu0 %v74
    %897 = vmatprep.subr.mxu0 0.0
    %898 = vmatpush1.msra.mxu0 0.0
    %899 = vmatprep.subr.mxu0 0.0
    %900 = vmatpush1.msra.mxu0 0.0
    %901 = vmatprep.subr.mxu0 0.0
    %902 = vmatpush1.msra.mxu0 0.0
    %903 = vmatprep.subr.mxu0 0.0
    %904 = vmatpush1.msra.mxu0 0.0
    %905 = vmatprep.subr.mxu0 0.0
    %906 = vmatpush1.msra.mxu0 0.0
    %907 = vmatprep.subr.mxu0 0.0
    %908 = vmatpush1.msra.mxu0 0.0
    %909 = vmatprep.subr.mxu0 0.0
    %910 = vmatpush1.msra.mxu0 0.0
    %911 = vmatprep.subr.mxu0 0.0
    %912 = vmatpush1.msra.mxu0 0.0
    %913 = vmatprep.subr.mxu0 0.0
    %914 = vmatpush1.msra.mxu0 0.0
    %915 = vmatprep.subr.mxu0 0.0
    %916 = vmatpush1.msra.mxu0 0.0
    %917 = vmatprep.subr.mxu0 0.0
    %918 = vmatpush1.msra.mxu0 0.0
    %919 = vmatprep.subr.mxu0 0.0
    %920 = vmatpush1.msra.mxu0 0.0
    %921 = vmatprep.subr.mxu0 0.0
    %922 = vmatpush1.msra.mxu0 0.0
    %923 = vmatprep.subr.mxu0 0.0
    %924 = vmatpush1.msra.mxu0 0.0
    %925 = vmatprep.subr.mxu0 0.0
    %926 = vmatpush1.msra.mxu0 0.0
    %927 = vmatprep.subr.mxu0 0.0
    %928 = vmatpush1.msra.mxu0 0.0
    %929 = vmatprep.subr.mxu0 0.0
    %930 = vmatpush1.msra.mxu0 0.0
    %931 = vmatprep.subr.mxu0 0.0
    %932 = vmatpush1.msra.mxu0 0.0
    %933 = vmatprep.subr.mxu0 0.0
    %934 = vmatpush1.msra.mxu0 0.0
    %935 = vmatprep.subr.mxu0 0.0
    %936 = vmatpush1.msra.mxu0 0.0
    %937 = vmatprep.subr.mxu0 0.0
    %938 = vmatpush1.msra.mxu0 0.0
    %939 = vmatprep.subr.mxu0 0.0
    %940 = vmatpush1.msra.mxu0 0.0
    %941 = vmatprep.subr.mxu0 0.0
    %942 = vmatpush1.msra.mxu0 0.0
    %943 = vmatprep.subr.mxu0 0.0
    %944 = vmatpush1.msra.mxu0 0.0
    %945 = vmatprep.subr.mxu0 0.0
    %946 = vmatpush1.msra.mxu0 0.0
    %947 = vmatprep.subr.mxu0 0.0
    %948 = vmatpush1.msra.mxu0 0.0
    %949 = vmatprep.subr.mxu0 0.0
    %950 = vmatpush1.msra.mxu0 0.0
    %951 = vmatprep.subr.mxu0 0.0
    %952 = vmatpush1.msra.mxu0 0.0
    %953 = vmatprep.mubr.f32.mxu0 0.0
    %954 = vmatmul.mubr.f32.gmra.mrb[0].mxu0 %v887
    %v955 = vpop.f32.mrb[0].mxu0
    %v956 = vadd.f32 0.0, %v955
    %v957 = vpop.f32.mrb[0].mxu0
    %v958 = vadd.f32 0.0, %v957
    %959 = vdwg.mxu0
    %v961 = vsel %vm421, %v885, 0
    %963 = vmatprep.subr.mxu0 %v77
    %964 = vmatpush1.msra.mxu0 %v76
    %965 = vmatprep.subr.mxu0 %v79
    %966 = vmatpush1.msra.mxu0 %v78
    %967 = vmatprep.subr.mxu0 %v81
    %968 = vmatpush1.msra.mxu0 %v80
    %969 = vmatprep.subr.mxu0 %v83
    %970 = vmatpush1.msra.mxu0 %v82
    %971 = vmatprep.subr.mxu0 0.0
    %972 = vmatpush1.msra.mxu0 0.0
    %973 = vmatprep.subr.mxu0 0.0
    %974 = vmatpush1.msra.mxu0 0.0
    %975 = vmatprep.subr.mxu0 0.0
    %976 = vmatpush1.msra.mxu0 0.0
    %977 = vmatprep.subr.mxu0 0.0
    %978 = vmatpush1.msra.mxu0 0.0
    %979 = vmatprep.subr.mxu0 0.0
    %980 = vmatpush1.msra.mxu0 0.0
    %981 = vmatprep.subr.mxu0 0.0
    %982 = vmatpush1.msra.mxu0 0.0
    %983 = vmatprep.subr.mxu0 0.0
    %984 = vmatpush1.msra.mxu0 0.0
    %985 = vmatprep.subr.mxu0 0.0
    %986 = vmatpush1.msra.mxu0 0.0
    %987 = vmatprep.subr.mxu0 0.0
    %988 = vmatpush1.msra.mxu0 0.0
    %989 = vmatprep.subr.mxu0 0.0
    %990 = vmatpush1.msra.mxu0 0.0
    %991 = vmatprep.subr.mxu0 0.0
    %992 = vmatpush1.msra.mxu0 0.0
    %993 = vmatprep.subr.mxu0 0.0
    %994 = vmatpush1.msra.mxu0 0.0
    %995 = vmatprep.subr.mxu0 0.0
    %996 = vmatpush1.msra.mxu0 0.0
    %997 = vmatprep.subr.mxu0 0.0
    %998 = vmatpush1.msra.mxu0 0.0
    %999 = vmatprep.subr.mxu0 0.0
    %1000 = vmatpush1.msra.mxu0 0.0
    %1001 = vmatprep.subr.mxu0 0.0
    %1002 = vmatpush1.msra.mxu0 0.0
    %1003 = vmatprep.subr.mxu0 0.0
    %1004 = vmatpush1.msra.mxu0 0.0
    %1005 = vmatprep.subr.mxu0 0.0
    %1006 = vmatpush1.msra.mxu0 0.0
    %1007 = vmatprep.subr.mxu0 0.0
    %1008 = vmatpush1.msra.mxu0 0.0
    %1009 = vmatprep.subr.mxu0 0.0
    %1010 = vmatpush1.msra.mxu0 0.0
    %1011 = vmatprep.subr.mxu0 0.0
    %1012 = vmatpush1.msra.mxu0 0.0
    %1013 = vmatprep.subr.mxu0 0.0
    %1014 = vmatpush1.msra.mxu0 0.0
    %1015 = vmatprep.subr.mxu0 0.0
    %1016 = vmatpush1.msra.mxu0 0.0
    %1017 = vmatprep.subr.mxu0 0.0
    %1018 = vmatpush1.msra.mxu0 0.0
    %1019 = vmatprep.subr.mxu0 0.0
    %1020 = vmatpush1.msra.mxu0 0.0
    %1021 = vmatprep.subr.mxu0 0.0
    %1022 = vmatpush1.msra.mxu0 0.0
    %1023 = vmatprep.subr.mxu0 0.0
    %1024 = vmatpush1.msra.mxu0 0.0
    %1025 = vmatprep.subr.mxu0 0.0
    %1026 = vmatpush1.msra.mxu0 0.0
    %1027 = vmatprep.mubr.f32.mxu0 0.0
    %1028 = vmatmul.mubr.f32.gmra.mrb[0].mxu0 %v961
    %v1029 = vpop.f32.mrb[0].mxu0
    %v1030 = vadd.f32 0.0, %v1029
    %v1031 = vpop.f32.mrb[0].mxu0
    %v1032 = vadd.f32 0.0, %v1031
    %1033 = vdwg.mxu0
    %v1036 = vcombine.low %v956, %v958
    %v1038 = vmul.f32 %v582, %v1036
    %v1041 = vcombine.low %v1030, %v1032
    %v1043 = vmul.f32 %v1038, %v1041
    %s1044 = scalar_lea.vmem [#allocation2], 8
    %1045 = vst [vmem:[%s1044] sm:$0xff] %v1043
    // Predicated region
    $region42: #{tpu_custom_call.1} parent=1 // pred_check
      _
    $region43: #{tpu_custom_call.1} parent=1 // pred_check_branch
      %1047 = sbr.rel (0) target = $region45
    $region44: #{tpu_custom_call.1} parent=1 // pred_region
      %s1049 = ssub.s32 256, 256
      %1050 = vsyncadd [#allocation3], %s1049
      %s1051 = sshll.u32 [#allocation2], 4
      %s1052 = int_to_ptr.vmem [resolvable:$true] %s1051
      %1057 = dma.vmem_to_hbm [thread:$0]  %s1052, 256, %s10, [#allocation3], 128, 128, 8
    $region45: #{tpu_custom_call.1} parent=1 // pred_fallthru
      _
    // Predicated region
    $region46: #{tpu_custom_call.1} parent=1 // pred_check
      _
    $region47: #{tpu_custom_call.1} parent=1 // pred_check_branch
      %1059 = sbr.rel (0) target = $region49
    $region48: #{tpu_custom_call.1} parent=1 // pred_region
      %1060 = dma.done [#allocation3], 256
    $region49: #{tpu_custom_call.1} parent=1 // pred_fallthru
      _
    %1061 = vsyncpa [#allocation3], 1

</llo_original>
